<compile_context>
chip_gen: v5e
topology: v5e:2x2
jax: 0.10.0
libtpu: 0.0.40
codegen_flags: <defaults>
</compile_context>

<pallas_src>
import functools

import jax
import jax.numpy as jnp
from jax.experimental import pallas as pl
from jax.experimental.pallas import tpu as pltpu

DROP_P = 0.3
INV_KEEP = 1.0 / (1.0 - DROP_P)
LANE = 128      # f32 lane width
SUBLANE = 8     # f32 sublane width
VMEM_TILE_BUDGET = 8 << 20   # per-step operand bytes; double-buffered stays under v5e's 16 MiB scoped VMEM
STEP_NS = 350.0              # ~fixed per-grid-step cost
HBM_BYTES_PER_NS = 1.3e3     # ~v6e HBM bandwidth; only used to choose a tile size


def _round_up(n, m):
    return (n + m - 1) // m * m


def _pick_tb(bpk, row_bytes):
    """Pick the batch tile (packed rows) and the padded packed-batch size."""
    cands = [tb for tb in (2048, 1024, 512, 256, 128, 64, 32)
             if tb * row_bytes <= VMEM_TILE_BUDGET] or [32]
    b32 = _round_up(max(bpk, 1), 32)   # keep blocks >= (32, 128): legal for uint8 & f32
    best = None
    for tb in cands:
        bp = _round_up(b32, tb)
        cost = (bp // tb) * STEP_NS + bp * row_bytes / HBM_BYTES_PER_NS
        if best is None or cost < best[0]:
            best = (cost, tb, bp)
    _, tb, bp = best
    # Ensure >=2 grid steps when there is enough work so v7x's 2nd TC helps.
    if bp // tb < 2 and tb > cands[-1] and bp * row_bytes > (1 << 20):
        tb //= 2
    return tb, bp


def _dims(B, D, HID):
    # Pack P logical D-wide rows per 128-lane physical row when that makes the
    # row lane-dense (D=64 -> P=2); otherwise fall back to unpacked rows
    # (blocks then equal the full last dim, which is still legal).
    P = 1
    for p in (1, 2, 4, 8):
        if (D * p) % LANE == 0:
            P = p
            break
    DP = D * P                                     # packed feature width
    HP = _round_up(HID, max(LANE // P, SUBLANE))   # per-logical-row hidden width
    HD = HP * P                                    # packed hidden width (multiple of 128)
    row_bytes = 2 * DP * 4 + HD                    # x + out (f32) + keep-mask (u8) per packed row
    TB, BPpk = _pick_tb(pl.cdiv(B, P), row_bytes)
    BPl = BPpk * P                                 # padded logical batch
    return P, DP, HP, HD, TB, BPpk, BPl


def _keep_mask(key, rows, cols):
    # uint8 keep mask (1 = keep); the 1/(1-p) scale is applied inside the kernel.
    # TODO(synk): RNG stream differs from torch.dropout (semantics match, bits don't).
    return jax.random.bernoulli(key, 1.0 - DROP_P, (rows, cols)).astype(jnp.uint8)


def _block_diag(w, p):
    # [[w,0],[0,w],...] with p diagonal blocks (weights are tiny; built once).
    return w if p == 1 else jnp.kron(jnp.eye(p, dtype=w.dtype), w)


def _forward_body(x_ref, w1_ref, b1_ref, w2_ref, b2_ref, o_ref, keep_u8):
    # fc1 + tanh (MXU matmul, f32 accumulate; tanh on the EUP)
    h = jnp.tanh(
        jnp.dot(x_ref[...], w1_ref[...], preferred_element_type=jnp.float32)
        + b1_ref[...]
    )
    if keep_u8 is not None:
        # inverted dropout: uint8 keep-mask streamed, scaled by 1/(1-p) in vregs
        h = h * (keep_u8.astype(jnp.float32) * INV_KEEP)
    # fc2
    o_ref[...] = (
        jnp.dot(h, w2_ref[...], preferred_element_type=jnp.float32) + b2_ref[...]
    ).astype(o_ref.dtype)


def _ae_train_kernel(x_ref, keep_ref, w1_ref, b1_ref, w2_ref, b2_ref, o_ref):
    _forward_body(x_ref, w1_ref, b1_ref, w2_ref, b2_ref, o_ref, keep_ref[...])


def _ae_eval_kernel(x_ref, w1_ref, b1_ref, w2_ref, b2_ref, o_ref):
    _forward_body(x_ref, w1_ref, b1_ref, w2_ref, b2_ref, o_ref, None)


@functools.partial(jax.jit, static_argnames=("train",))
def simple_ae_forward(x, w1, b1, w2, b2, key, train=True):
    B, H, W, C = x.shape
    D = H * W * C
    HID = w1.shape[1]
    P, DP, HP, HD, TB, BPpk, BPl = _dims(B, D, HID)

    # Flatten (matches torch .view(-1, input_size)); pad only tail batch rows,
    # then view P consecutive logical rows as one lane-dense packed row (the
    # reshape of the contiguous buffer is free).
    x2 = x.reshape(B, D).astype(jnp.float32)
    xpk = jnp.pad(x2, ((0, BPl - B), (0, 0))).reshape(BPpk, DP)

    # Block-diagonal weights so one packed row computes P independent rows.
    w1p = jnp.pad(w1.astype(jnp.float32), ((0, 0), (0, HP - HID)))
    w2p = jnp.pad(w2.astype(jnp.float32), ((0, HP - HID), (0, 0)))
    w1e = _block_diag(w1p, P)                                          # (DP, HD)
    w2e = _block_diag(w2p, P)                                          # (HD, DP)
    b1e = jnp.tile(jnp.pad(b1.astype(jnp.float32), ((0, 0), (0, HP - HID))), (1, P))
    b2e = jnp.tile(b2.astype(jnp.float32), (1, P))                     # (1, DP)

    in_specs = [pl.BlockSpec((TB, DP), lambda i: (i, 0))]   # x: tiled over packed batch
    operands = [xpk]
    if train:
        keep = _keep_mask(key, BPl, HP).reshape(BPpk, HD)   # uint8, lane-dense
        in_specs.append(pl.BlockSpec((TB, HD), lambda i: (i, 0)))
        operands.append(keep)
    in_specs += [
        pl.BlockSpec((DP, HD), lambda i: (0, 0)),  # w1: VMEM-resident across grid steps
        pl.BlockSpec((1, HD), lambda i: (0, 0)),   # b1
        pl.BlockSpec((HD, DP), lambda i: (0, 0)),  # w2
        pl.BlockSpec((1, DP), lambda i: (0, 0)),   # b2
    ]
    operands += [w1e, b1e, w2e, b2e]

    cost = pl.CostEstimate(
        flops=4 * BPpk * DP * HD,                  # two MXU matmuls, 2*M*K*N each
        transcendentals=BPpk * HD,                 # tanh
        bytes_accessed=2 * BPpk * DP * 4 + 2 * DP * HD * 4 + (HD + DP) * 4
        + (BPpk * HD if train else 0),
    )

    out = pl.pallas_call(
        _ae_train_kernel if train else _ae_eval_kernel,
        out_shape=jax.ShapeDtypeStruct((BPpk, DP), jnp.float32),
        grid=(BPpk // TB,),
        in_specs=in_specs,
        out_specs=pl.BlockSpec((TB, DP), lambda i: (i, 0)),
        compiler_params=pltpu.CompilerParams(dimension_semantics=("parallel",)),
        cost_estimate=cost,
    )(*operands)

    # Unpack rows (free, contiguous view), drop padded tail rows, restore NHWC.
    return out.reshape(BPl, D)[:B].reshape(B, H, W, C)


def _reference_forward(x, w1, b1, w2, b2, mask=None):
    # pure-JAX reference (optionally with an explicit dropout scale mask)
    B = x.shape[0]
    D = w1.shape[0]
    h = jnp.tanh(x.reshape(B, D) @ w1 + b1)
    if mask is not None:
        h = h * mask
    return (h @ w2 + b2).reshape(x.shape)


if __name__ == "__main__":
    # module hyper-params: grid_h=4, grid_w=4, chs=4 -> input_size = 64
    B, GH, GW, CHS = 2, 4, 4, 4
    D = GH * GW * CHS
    HID = 50

    key = jax.random.PRNGKey(0)
    kx, k1, k2, k3, k4, kdrop = jax.random.split(key, 6)

    x = jax.random.uniform(kx, (B, GH, GW, CHS), dtype=jnp.float32)
    # torch.rand(size=...) -> uniform [0, 1)
    w1 = jax.random.uniform(k1, (D, HID), dtype=jnp.float32)
    b1 = jax.random.uniform(k2, (1, HID), dtype=jnp.float32)
    w2 = jax.random.uniform(k3, (HID, D), dtype=jnp.float32)
    b2 = jax.random.uniform(k4, (1, D), dtype=jnp.float32)

    # eval path (train=False; dropout is identity) vs pure-JAX reference
    out_eval = simple_ae_forward(x, w1, b1, w2, b2, kdrop, train=False)
    jax.block_until_ready(out_eval)
    ref_eval = _reference_forward(x, w1, b1, w2, b2)
    assert out_eval.shape == (B, GH, GW, CHS)
    assert jnp.allclose(out_eval, ref_eval, atol=1e-4, rtol=1e-4), "eval mismatch"

    # training path: rebuild the identical uint8 keep-mask for an exact check
    out_train = simple_ae_forward(x, w1, b1, w2, b2, kdrop, train=True)
    jax.block_until_ready(out_train)
    _, _, HP, _, _, _, BPl = _dims(B, D, HID)
    mask = _keep_mask(kdrop, BPl, HP)[:B, :HID].astype(jnp.float32) * INV_KEEP
    ref_train = _reference_forward(x, w1, b1, w2, b2, mask)
    assert out_train.shape == (B, GH, GW, CHS)
    assert jnp.allclose(out_train, ref_train, atol=1e-4, rtol=1e-4), "train mismatch"

    print("KERNEL_OK")
</pallas_src>

<mosaic_0001>
module attributes {stable_mosaic.version = 11 : i64} {
  func.func @_ae_eval_kernel(%arg0: i32, %arg1: memref<32x128xf32, #tpu.memory_space<vmem>>, %arg2: memref<128x128xf32, #tpu.memory_space<vmem>>, %arg3: memref<1x128xf32, #tpu.memory_space<vmem>>, %arg4: memref<128x128xf32, #tpu.memory_space<vmem>>, %arg5: memref<1x128xf32, #tpu.memory_space<vmem>>, %arg6: memref<32x128xf32, #tpu.memory_space<vmem>>) attributes {dimension_semantics = [#tpu.dimension_semantics<parallel>], iteration_bounds = array<i64: 1>, scalar_prefetch = 0 : i64, scratch_operands = 0 : i64, tpu.core_type = #tpu.core_type<tc>, window_params = [{transform_indices = @transform_0, window_bounds = array<i64: 32, 128>}, {pipeline_mode = #tpu.pipeline_mode<synchronous>, transform_indices = @transform_1, window_bounds = array<i64: 128, 128>}, {pipeline_mode = #tpu.pipeline_mode<synchronous>, transform_indices = @transform_2, window_bounds = array<i64: 1, 128>}, {pipeline_mode = #tpu.pipeline_mode<synchronous>, transform_indices = @transform_3, window_bounds = array<i64: 128, 128>}, {pipeline_mode = #tpu.pipeline_mode<synchronous>, transform_indices = @transform_4, window_bounds = array<i64: 1, 128>}, {transform_indices = @transform_5, window_bounds = array<i64: 32, 128>}]} {
    %c0 = arith.constant 0 : index
    %c0_0 = arith.constant 0 : index
    %0 = vector.load %arg1[%c0, %c0_0] : memref<32x128xf32, #tpu.memory_space<vmem>>, vector<32x128xf32>
    %c0_1 = arith.constant 0 : index
    %c0_2 = arith.constant 0 : index
    %1 = vector.load %arg2[%c0_1, %c0_2] : memref<128x128xf32, #tpu.memory_space<vmem>>, vector<128x128xf32>
    %cst = arith.constant dense<0.000000e+00> : vector<32x128xf32>
    %2 = tpu.matmul %0, %1, %cst {dimension_numbers = #tpu.dot_dimension_numbers<[1], [0], [0], [1], [0, 0, 1, 1], [], []>} : vector<32x128xf32>, vector<128x128xf32>, vector<32x128xf32> -> vector<32x128xf32>
    %c0_3 = arith.constant 0 : index
    %c0_4 = arith.constant 0 : index
    %3 = vector.load %arg3[%c0_3, %c0_4] : memref<1x128xf32, #tpu.memory_space<vmem>>, vector<1x128xf32>
    %4 = vector.broadcast %3 : vector<1x128xf32> to vector<32x128xf32>
    %5 = arith.addf %2, %4 : vector<32x128xf32>
    %6 = math.tanh %5 : vector<32x128xf32>
    %c0_5 = arith.constant 0 : index
    %c0_6 = arith.constant 0 : index
    %7 = vector.load %arg4[%c0_5, %c0_6] : memref<128x128xf32, #tpu.memory_space<vmem>>, vector<128x128xf32>
    %cst_7 = arith.constant dense<0.000000e+00> : vector<32x128xf32>
    %8 = tpu.matmul %6, %7, %cst_7 {dimension_numbers = #tpu.dot_dimension_numbers<[1], [0], [0], [1], [0, 0, 1, 1], [], []>} : vector<32x128xf32>, vector<128x128xf32>, vector<32x128xf32> -> vector<32x128xf32>
    %c0_8 = arith.constant 0 : index
    %c0_9 = arith.constant 0 : index
    %9 = vector.load %arg5[%c0_8, %c0_9] : memref<1x128xf32, #tpu.memory_space<vmem>>, vector<1x128xf32>
    %10 = vector.broadcast %9 : vector<1x128xf32> to vector<32x128xf32>
    %11 = arith.addf %8, %10 : vector<32x128xf32>
    %c0_10 = arith.constant 0 : index
    %c0_11 = arith.constant 0 : index
    %12 = vector.load %arg6[%c0_10, %c0_11] : memref<32x128xf32, #tpu.memory_space<vmem>>, vector<32x128xf32>
    tpu.vector_store %arg6[%c0_10, %c0_11], %11 {strides = array<i32>} : memref<32x128xf32, #tpu.memory_space<vmem>>, vector<32x128xf32>,
    return
  }
  func.func @transform_0(%arg0: i32) -> (i32, i32) {
    %c0_i32 = arith.constant 0 : i32
    %c0_i32_0 = arith.constant 0 : i32
    return %arg0, %c0_i32 : i32, i32
  }
  func.func @transform_1(%arg0: i32) -> (i32, i32) {
    %c0_i32 = arith.constant 0 : i32
    %c0_i32_0 = arith.constant 0 : i32
    %c0_i32_1 = arith.constant 0 : i32
    return %c0_i32, %c0_i32_0 : i32, i32
  }
  func.func @transform_2(%arg0: i32) -> (i32, i32) {
    %c0_i32 = arith.constant 0 : i32
    %c0_i32_0 = arith.constant 0 : i32
    %c0_i32_1 = arith.constant 0 : i32
    return %c0_i32, %c0_i32_0 : i32, i32
  }
  func.func @transform_3(%arg0: i32) -> (i32, i32) {
    %c0_i32 = arith.constant 0 : i32
    %c0_i32_0 = arith.constant 0 : i32
    %c0_i32_1 = arith.constant 0 : i32
    return %c0_i32, %c0_i32_0 : i32, i32
  }
  func.func @transform_4(%arg0: i32) -> (i32, i32) {
    %c0_i32 = arith.constant 0 : i32
    %c0_i32_0 = arith.constant 0 : i32
    %c0_i32_1 = arith.constant 0 : i32
    return %c0_i32, %c0_i32_0 : i32, i32
  }
  func.func @transform_5(%arg0: i32) -> (i32, i32) {
    %c0_i32 = arith.constant 0 : i32
    %c0_i32_0 = arith.constant 0 : i32
    return %arg0, %c0_i32 : i32, i32
  }
}

</mosaic_0001>

<llo_original>
// kernel: simple_ae_forward.1
$region0: #{simple_ae_forward.1}
  #allocation0 [shape = 'u32[]', space=smem, size = 0x4, offset = 0x4, fixed_abs, tag = 'smem constant byte address 0x4 - core index']
  #allocation1 [shape = 'u32[72,128]{1,0:T(1,128)}', space=vmem, size = 0x9000, scoped, tag = 'internal scratch']
  %s0 = inlined_call_operand.vmem [shape: f32[32,128], index: 0, kind: input, shape index: {}]
  %s1 = inlined_call_operand.vmem [shape: f32[128,128], index: 1, kind: input, shape index: {}]
  %s2 = inlined_call_operand.vmem [shape: f32[1,128], index: 2, kind: input, shape index: {}]
  %s3 = inlined_call_operand.vmem [shape: f32[128,128], index: 3, kind: input, shape index: {}]
  %s4 = inlined_call_operand.vmem [shape: f32[1,128], index: 4, kind: input, shape index: {}]
  %s5 = inlined_call_operand.vmem [shape: f32[32,128], index: 5, kind: output, shape index: {}]
  %s6 = sld [smem:[#allocation0]]
  $region30: #{simple_ae_forward.1} parent=0
    _
  %s8 = ssub.s32 1, %s6
  %s9 = scalar_select 0, %s8, %s6
  // Predicated region
  $region2: #{simple_ae_forward.1} parent=0 // pred_check
    _
  $region3: #{simple_ae_forward.1} parent=0 // pred_check_branch
    %11 = sbr.rel (0) target = $region5
  $region4: #{simple_ae_forward.1} parent=0 // pred_region
    _
  $region5: #{simple_ae_forward.1} parent=0 // pred_fallthru
    _
  // Predicated region
  $region6: #{simple_ae_forward.1} parent=0 // pred_check
    _
  $region7: #{simple_ae_forward.1} parent=0 // pred_check_branch
    %13 = sbr.rel (0) target = $region9
  $region8: #{simple_ae_forward.1} parent=0 // pred_region
    _
  $region9: #{simple_ae_forward.1} parent=0 // pred_fallthru
    _
  // Predicated region
  $region10: #{simple_ae_forward.1} parent=0 // pred_check
    _
  $region11: #{simple_ae_forward.1} parent=0 // pred_check_branch
    %15 = sbr.rel (0) target = $region13
  $region12: #{simple_ae_forward.1} parent=0 // pred_region
    _
  $region13: #{simple_ae_forward.1} parent=0 // pred_fallthru
    _
  // Predicated region
  $region14: #{simple_ae_forward.1} parent=0 // pred_check
    _
  $region15: #{simple_ae_forward.1} parent=0 // pred_check_branch
    %17 = sbr.rel (0) target = $region17
  $region16: #{simple_ae_forward.1} parent=0 // pred_region
    _
  $region17: #{simple_ae_forward.1} parent=0 // pred_fallthru
    _
  // Predicated region
  $region18: #{simple_ae_forward.1} parent=0 // pred_check
    _
  $region19: #{simple_ae_forward.1} parent=0 // pred_check_branch
    %19 = sbr.rel (0) target = $region21
  $region20: #{simple_ae_forward.1} parent=0 // pred_region
    _
  $region21: #{simple_ae_forward.1} parent=0 // pred_fallthru
    _
  %v20 = vld [vmem:[%s0] sm:$0xff]
  %v21 = vld [vmem:[%s0 + $0x8] sm:$0xff]
  %v22 = vld [vmem:[%s0 + $0x10] sm:$0xff]
  %v23 = vld [vmem:[%s0 + $0x18] sm:$0xff]
  %v24 = vld [vmem:[%s1] sm:$0xff]
  %v25 = vld [vmem:[%s1 + $0x8] sm:$0xff]
  %v26 = vld [vmem:[%s1 + $0x10] sm:$0xff]
  %v27 = vld [vmem:[%s1 + $0x18] sm:$0xff]
  %v28 = vld [vmem:[%s1 + $0x20] sm:$0xff]
  %v29 = vld [vmem:[%s1 + $0x28] sm:$0xff]
  %v30 = vld [vmem:[%s1 + $0x30] sm:$0xff]
  %v31 = vld [vmem:[%s1 + $0x38] sm:$0xff]
  %v32 = vld [vmem:[%s1 + $0x40] sm:$0xff]
  %v33 = vld [vmem:[%s1 + $0x48] sm:$0xff]
  %v34 = vld [vmem:[%s1 + $0x50] sm:$0xff]
  %v35 = vld [vmem:[%s1 + $0x58] sm:$0xff]
  %v36 = vld [vmem:[%s1 + $0x60] sm:$0xff]
  %v37 = vld [vmem:[%s1 + $0x68] sm:$0xff]
  %v38 = vld [vmem:[%s1 + $0x70] sm:$0xff]
  %v39 = vld [vmem:[%s1 + $0x78] sm:$0xff]
  %v40 = vld [vmem:[%s2] sm:$0x1]
  %v42 = vperm.slane %v40, 0
  %44 = vmatpush.msra.mxu0 %v39
  %45 = vmatpush.msra.mxu0 %v38
  %46 = vmatpush.msra.mxu0 %v37
  %47 = vmatpush.msra.mxu0 %v36
  %48 = vmatpush.msra.mxu0 %v35
  %49 = vmatpush.msra.mxu0 %v34
  %50 = vmatpush.msra.mxu0 %v33
  %51 = vmatpush.msra.mxu0 %v32
  %52 = vmatpush.msra.mxu0 %v31
  %53 = vmatpush.msra.mxu0 %v30
  %54 = vmatpush.msra.mxu0 %v29
  %55 = vmatpush.msra.mxu0 %v28
  %56 = vmatpush.msra.mxu0 %v27
  %57 = vmatpush.msra.mxu0 %v26
  %58 = vmatpush.msra.mxu0 %v25
  %59 = vmatpush.msra.mxu0 %v24
  %60 = vmatmul.f32.gmra.mxu0 %v20
  %v61 = vpop.f32.mrf.mxu0
  %v62 = vadd.f32 %v42, %v61
  %63 = vmatmul.f32.gmra.mxu0 %v21
  %v64 = vpop.f32.mrf.mxu0
  %v65 = vadd.f32 %v42, %v64
  %66 = vmatmul.f32.gmra.mxu0 %v22
  %v67 = vpop.f32.mrf.mxu0
  %v68 = vadd.f32 %v42, %v67
  %69 = vmatmul.f32.gmra.mxu0 %v23
  %v70 = vpop.f32.mrf.mxu0
  %v71 = vadd.f32 %v42, %v70
  %72 = vdwg.mxu0
  %v73 = vtanh.pop %v62
  %v74 = vtanh.pop %v65
  %v75 = vtanh.pop %v68
  %v76 = vtanh.pop %v71
  %v77 = vld [vmem:[%s3] sm:$0xff]
  %v78 = vld [vmem:[%s3 + $0x8] sm:$0xff]
  %v79 = vld [vmem:[%s3 + $0x10] sm:$0xff]
  %v80 = vld [vmem:[%s3 + $0x18] sm:$0xff]
  %v81 = vld [vmem:[%s3 + $0x20] sm:$0xff]
  %v82 = vld [vmem:[%s3 + $0x28] sm:$0xff]
  %v83 = vld [vmem:[%s3 + $0x30] sm:$0xff]
  %v84 = vld [vmem:[%s3 + $0x38] sm:$0xff]
  %v85 = vld [vmem:[%s3 + $0x40] sm:$0xff]
  %v86 = vld [vmem:[%s3 + $0x48] sm:$0xff]
  %v87 = vld [vmem:[%s3 + $0x50] sm:$0xff]
  %v88 = vld [vmem:[%s3 + $0x58] sm:$0xff]
  %v89 = vld [vmem:[%s3 + $0x60] sm:$0xff]
  %v90 = vld [vmem:[%s3 + $0x68] sm:$0xff]
  %v91 = vld [vmem:[%s3 + $0x70] sm:$0xff]
  %v92 = vld [vmem:[%s3 + $0x78] sm:$0xff]
  %v93 = vld [vmem:[%s4] sm:$0x1]
  %v95 = vperm.slane %v93, 0
  %97 = vmatpush.msra.mxu0 %v92
  %98 = vmatpush.msra.mxu0 %v91
  %99 = vmatpush.msra.mxu0 %v90
  %100 = vmatpush.msra.mxu0 %v89
  %101 = vmatpush.msra.mxu0 %v88
  %102 = vmatpush.msra.mxu0 %v87
  %103 = vmatpush.msra.mxu0 %v86
  %104 = vmatpush.msra.mxu0 %v85
  %105 = vmatpush.msra.mxu0 %v84
  %106 = vmatpush.msra.mxu0 %v83
  %107 = vmatpush.msra.mxu0 %v82
  %108 = vmatpush.msra.mxu0 %v81
  %109 = vmatpush.msra.mxu0 %v80
  %110 = vmatpush.msra.mxu0 %v79
  %111 = vmatpush.msra.mxu0 %v78
  %112 = vmatpush.msra.mxu0 %v77
  %113 = vmatmul.f32.gmra.mxu0 %v73
  %v114 = vpop.f32.mrf.mxu0
  %v115 = vadd.f32 %v95, %v114
  %116 = vmatmul.f32.gmra.mxu0 %v74
  %v117 = vpop.f32.mrf.mxu0
  %v118 = vadd.f32 %v95, %v117
  %119 = vmatmul.f32.gmra.mxu0 %v75
  %v120 = vpop.f32.mrf.mxu0
  %v121 = vadd.f32 %v95, %v120
  %122 = vmatmul.f32.gmra.mxu0 %v76
  %v123 = vpop.f32.mrf.mxu0
  %v124 = vadd.f32 %v95, %v123
  %125 = vdwg.mxu0
  %126 = vst [vmem:[%s5] sm:$0xff] %v115
  %127 = vst [vmem:[%s5 + $0x8] sm:$0xff] %v118
  %128 = vst [vmem:[%s5 + $0x10] sm:$0xff] %v121
  %129 = vst [vmem:[%s5 + $0x18] sm:$0xff] %v124
  // Predicated region
  $region22: #{simple_ae_forward.1} parent=0 // pred_check
    _
  $region23: #{simple_ae_forward.1} parent=0 // pred_check_branch
    %131 = sbr.rel (0) target = $region25
  $region24: #{simple_ae_forward.1} parent=0 // pred_region
    _
  $region25: #{simple_ae_forward.1} parent=0 // pred_fallthru
    _
  // Predicated region
  $region26: #{simple_ae_forward.1} parent=0 // pred_check
    _
  $region27: #{simple_ae_forward.1} parent=0 // pred_check_branch
    %133 = sbr.rel (0) target = $region29
  $region28: #{simple_ae_forward.1} parent=0 // pred_region
    _
  $region29: #{simple_ae_forward.1} parent=0 // pred_fallthru
    _

</llo_original>
